<compile_context>
chip_gen: v5e
topology: v5e:2x2
jax: 0.10.0
libtpu: 0.0.40
codegen_flags: <defaults>
</compile_context>

<pallas_src>
import jax
import jax.numpy as jnp
from jax import lax
from jax.experimental import pallas as pl
from jax.experimental.pallas import tpu as pltpu


def _fused_up_kernel(x1_ref, x2_ref, cs_ref, rs_ref, w_ref, b_ref, o_ref):
    """One (batch, row-tile) step:  o = x2 + convT(x1) + bias  (all NCHW).

    x1_ref: VMEM (1, Cin, TH, W)        input row tile
    x2_ref: VMEM (1, Cout, 2*TH, 2*W)   residual tile (interior of x2)
    cs_ref: VMEM (2, W, 2*W)            column-interleave scatter matrices
    rs_ref: VMEM (2, 2*TH, TH)          row-interleave scatter matrices
    w_ref : SMEM (Cin*Cout*2*2,)        ConvTranspose2d weight, (i,o,kh,kw) flat
    b_ref : SMEM (Cout,)                bias
    o_ref : VMEM (1, Cout, 2*TH, 2*W)   output tile (aliased with x2's buffer)
    """
    _, cin, th, w_in = x1_ref.shape
    _, cout, _, _ = o_ref.shape
    f32 = jnp.float32

    # Resident constant scatter matrices (fetched once, same block every step).
    s_mats = [cs_ref[kw, :, :] for kw in range(2)]     # (W, 2W): col 2w+kw <- w
    r_mats = [rs_ref[kh, :, :] for kh in range(2)]     # (2TH, TH): row 2h+kh <- h

    # Load each input-channel plane once (reused by every (o, kh, kw)).
    x_planes = [x1_ref[0, i, :, :].astype(f32) for i in range(cin)]

    for o in range(cout):
        plane = None                                   # (2TH, 2W) accumulator
        for kh in range(2):
            row = None                                 # (TH, 2W) accumulator
            for kw in range(2):
                # z[h, w] = sum_i x1[i, h, w] * W[i, o, kh, kw]  (VPU FMAs)
                z = None
                for i in range(cin):
                    widx = ((i * cout + o) * 2 + kh) * 2 + kw
                    term = x_planes[i] * w_ref[widx]
                    z = term if z is None else z + term
                # scatter z to even/odd columns: (TH, W) @ (W, 2W)  (MXU)
                zc = jnp.dot(z, s_mats[kw], preferred_element_type=f32)
                row = zc if row is None else row + zc
            # scatter the row block to even/odd rows: (2TH, TH) @ (TH, 2W)
            pr = jnp.dot(r_mats[kh], row, preferred_element_type=f32)
            plane = pr if plane is None else plane + pr
        # dense, contiguous store of the whole (2TH, 2W) plane + residual + bias
        o_ref[0, o, :, :] = x2_ref[0, o, :, :] + plane + b_ref[o]


def _scatter_mats(th, w_in):
    """Constant 0/1 interleave matrices (constant-folded by XLA, DMA'd once)."""
    c_r = lax.broadcasted_iota(jnp.int32, (w_in, 2 * w_in), 0)
    c_c = lax.broadcasted_iota(jnp.int32, (w_in, 2 * w_in), 1)
    cs = jnp.stack([(c_c == 2 * c_r + kw).astype(jnp.float32) for kw in range(2)])
    r_r = lax.broadcasted_iota(jnp.int32, (2 * th, th), 0)
    r_c = lax.broadcasted_iota(jnp.int32, (2 * th, th), 1)
    rs = jnp.stack([(r_r == 2 * r_c + kh).astype(jnp.float32) for kh in range(2)])
    return cs, rs


def _pick_tile_h(h, w_in, cin, cout, budget=24 * 1024 * 1024):
    """Largest row tile that divides H, keeps sublane dims legal (multiple of 8
    or the full extent) and fits a double-buffered VMEM budget."""
    def est(th):
        lane = lambda n: ((n + 127) // 128) * 128
        sub = lambda n: ((n + 7) // 8) * 8
        x1_b = cin * sub(th) * lane(w_in) * 4
        xo_b = cout * sub(2 * th) * lane(2 * w_in) * 4
        scat = 2 * sub(w_in) * lane(2 * w_in) * 4 + 2 * sub(2 * th) * lane(th) * 4
        return 2 * (x1_b + 2 * xo_b) + scat    # in + out double-buffered + consts
    for th in (128, 64, 32, 16, 8):
        if h % th == 0 and est(th) <= budget:
            return th
    return 8 if h % 8 == 0 else h              # tiny / odd H: full-height tile


def up_forward(x1, x2, w, b):
    """Pallas version of up.forward.  NCHW in, NCHW out (matches PyTorch).

    x1: (N, Cin, H, W), x2: (N, Cin//2, H2, W2), w: (Cin, Cout, 2, 2), b: (Cout,)
    """
    n, cin, h, w_in = x1.shape
    cout = w.shape[1]
    n2, c2, h2, w2 = x2.shape
    assert n2 == n and c2 == cout and w.shape == (cin, cout, 2, 2)

    h1, w1 = 2 * h, 2 * w_in
    diff_y, diff_x = h2 - h1, w2 - w1
    # TODO(synk): PyTorch F.pad with negative pads *crops* x1; only the
    # pad / same-size case (diff >= 0) is implemented here.
    assert diff_y >= 0 and diff_x >= 0, "x2 must be >= 2x-upsampled x1 spatially"
    pad_t, pad_l = diff_y // 2, diff_x // 2

    x1 = x1.astype(jnp.float32)
    x2 = x2.astype(jnp.float32)
    w_flat = w.astype(jnp.float32).reshape(-1)       # (Cin*Cout*4,), (i,o,kh,kw)
    b_flat = b.astype(jnp.float32)

    # Interior of x2 overlapping the upsampled x1 (identity slice when diff==0).
    x2_in = lax.slice(x2, (0, 0, pad_t, pad_l), (n, cout, pad_t + h1, pad_l + w1))

    th = _pick_tile_h(h, w_in, cin, cout)
    grid = (n, h // th)
    cs, rs = _scatter_mats(th, w_in)

    flops = 2 * n * cout * cin * h1 * w1 + 2 * n * cout * h1 * w1
    bytes_accessed = 4 * (x1.size + 2 * n * cout * h1 * w1)
    cost = pl.CostEstimate(flops=flops, transcendentals=0,
                           bytes_accessed=bytes_accessed)

    out_interior = pl.pallas_call(
        _fused_up_kernel,
        out_shape=jax.ShapeDtypeStruct((n, cout, h1, w1), jnp.float32),
        grid=grid,
        in_specs=[
            pl.BlockSpec((1, cin, th, w_in), lambda ni, ti: (ni, 0, ti, 0)),
            pl.BlockSpec((1, cout, 2 * th, w1), lambda ni, ti: (ni, 0, ti, 0)),
            pl.BlockSpec((2, w_in, w1), lambda ni, ti: (0, 0, 0)),      # col scat
            pl.BlockSpec((2, 2 * th, th), lambda ni, ti: (0, 0, 0)),    # row scat
            pl.BlockSpec(memory_space=pltpu.MemorySpace.SMEM),          # weights
            pl.BlockSpec(memory_space=pltpu.MemorySpace.SMEM),          # bias
        ],
        out_specs=pl.BlockSpec((1, cout, 2 * th, w1), lambda ni, ti: (ni, 0, ti, 0)),
        input_output_aliases={1: 0},   # write result in-place over x2's interior
        cost_estimate=cost,
        compiler_params=pltpu.CompilerParams(
            dimension_semantics=("parallel", "parallel"),
            vmem_limit_bytes=32 * 1024 * 1024,
        ),
    )(x1, x2_in, cs, rs, w_flat, b_flat)

    if diff_y == 0 and diff_x == 0:
        return out_interior
    # Border (pad region of x1 is zero) comes straight from x2.
    return lax.dynamic_update_slice(x2, out_interior, (0, 0, pad_t, pad_l))


def _reference(x1, x2, w, b):
    """Pure-JAX reference of the PyTorch forward (for correctness check)."""
    n, cin, h, w_in = x1.shape
    cout = w.shape[1]
    y = jnp.einsum("nihw,iokl->nohkwl", x1, w).reshape(n, cout, 2 * h, 2 * w_in)
    y = y + b[None, :, None, None]
    h2, w2 = x2.shape[2], x2.shape[3]
    dy, dx = h2 - 2 * h, w2 - 2 * w_in
    y = jnp.pad(y, ((0, 0), (0, 0),
                    (dy // 2, dy - dy // 2), (dx // 2, dx - dx // 2)))
    return x2 + y


if __name__ == "__main__":
    # Small shapes consistent with the module: in_ch=4 -> out_ch=2,
    # x1 spatial 8x8 -> upsampled 16x16, x2 spatial 16x16 (diff = 0).
    in_ch = 4
    out_ch = in_ch // 2
    N, H, W = 2, 8, 8

    key = jax.random.PRNGKey(0)
    k1, k2, k3, k4 = jax.random.split(key, 4)

    x1 = jax.random.normal(k1, (N, in_ch, H, W), dtype=jnp.float32)
    x2 = jax.random.normal(k2, (N, out_ch, 2 * H, 2 * W), dtype=jnp.float32)
    w = 0.1 * jax.random.normal(k3, (in_ch, out_ch, 2, 2), dtype=jnp.float32)
    b = 0.1 * jax.random.normal(k4, (out_ch,), dtype=jnp.float32)

    out = jax.jit(up_forward)(x1, x2, w, b)
    out = jax.block_until_ready(out)

    ref = _reference(x1, x2, w, b)
    assert out.shape == ref.shape == (N, out_ch, 2 * H, 2 * W)
    assert jnp.allclose(out, ref, atol=1e-5, rtol=1e-5)

    print("KERNEL_OK")
</pallas_src>

<mosaic_0001>
module attributes {stable_mosaic.version = 11 : i64} {
  func.func @_fused_up_kernel(%arg0: i32, %arg1: i32, %arg2: memref<1x4x8x8xf32, #tpu.memory_space<vmem>>, %arg3: memref<1x2x16x16xf32, #tpu.memory_space<vmem>>, %arg4: memref<2x8x16xf32, #tpu.memory_space<vmem>>, %arg5: memref<2x16x8xf32, #tpu.memory_space<vmem>>, %arg6: memref<32xf32, #tpu.memory_space<smem>>, %arg7: memref<2xf32, #tpu.memory_space<smem>>, %arg8: memref<1x2x16x16xf32, #tpu.memory_space<vmem>>) attributes {dimension_semantics = [#tpu.dimension_semantics<parallel>, #tpu.dimension_semantics<parallel>], iteration_bounds = array<i64: 2, 1>, scalar_prefetch = 0 : i64, scratch_operands = 0 : i64, tpu.core_type = #tpu.core_type<tc>, window_params = [{transform_indices = @transform_0, window_bounds = array<i64: 1, 4, 8, 8>}, {transform_indices = @transform_1, window_bounds = array<i64: 1, 2, 16, 16>}, {pipeline_mode = #tpu.pipeline_mode<synchronous>, transform_indices = @transform_2, window_bounds = array<i64: 2, 8, 16>}, {pipeline_mode = #tpu.pipeline_mode<synchronous>, transform_indices = @transform_3, window_bounds = array<i64: 2, 16, 8>}, {transform_indices = @transform_4, window_bounds = array<i64: 32>}, {transform_indices = @transform_5, window_bounds = array<i64: 2>}, {transform_indices = @transform_6, window_bounds = array<i64: 1, 2, 16, 16>}]} {
    %c0 = arith.constant 0 : index
    %c0_0 = arith.constant 0 : index
    %c0_1 = arith.constant 0 : index
    %0 = vector.load %arg4[%c0, %c0_0, %c0_1] : memref<2x8x16xf32, #tpu.memory_space<vmem>>, vector<1x8x16xf32>
    %1 = vector.shape_cast %0 : vector<1x8x16xf32> to vector<8x16xf32>
    %c1 = arith.constant 1 : index
    %c0_2 = arith.constant 0 : index
    %c0_3 = arith.constant 0 : index
    %2 = vector.load %arg4[%c1, %c0_2, %c0_3] : memref<2x8x16xf32, #tpu.memory_space<vmem>>, vector<1x8x16xf32>
    %3 = vector.shape_cast %2 : vector<1x8x16xf32> to vector<8x16xf32>
    %c0_4 = arith.constant 0 : index
    %c0_5 = arith.constant 0 : index
    %c0_6 = arith.constant 0 : index
    %4 = vector.load %arg5[%c0_4, %c0_5, %c0_6] : memref<2x16x8xf32, #tpu.memory_space<vmem>>, vector<1x16x8xf32>
    %5 = vector.shape_cast %4 : vector<1x16x8xf32> to vector<16x8xf32>
    %c1_7 = arith.constant 1 : index
    %c0_8 = arith.constant 0 : index
    %c0_9 = arith.constant 0 : index
    %6 = vector.load %arg5[%c1_7, %c0_8, %c0_9] : memref<2x16x8xf32, #tpu.memory_space<vmem>>, vector<1x16x8xf32>
    %7 = vector.shape_cast %6 : vector<1x16x8xf32> to vector<16x8xf32>
    %c0_10 = arith.constant 0 : index
    %c0_11 = arith.constant 0 : index
    %c0_12 = arith.constant 0 : index
    %c0_13 = arith.constant 0 : index
    %8 = vector.load %arg2[%c0_10, %c0_11, %c0_12, %c0_13] : memref<1x4x8x8xf32, #tpu.memory_space<vmem>>, vector<1x1x8x8xf32>
    %9 = vector.shape_cast %8 : vector<1x1x8x8xf32> to vector<8x8xf32>
    %c0_14 = arith.constant 0 : index
    %c1_15 = arith.constant 1 : index
    %c0_16 = arith.constant 0 : index
    %c0_17 = arith.constant 0 : index
    %10 = vector.load %arg2[%c0_14, %c1_15, %c0_16, %c0_17] : memref<1x4x8x8xf32, #tpu.memory_space<vmem>>, vector<1x1x8x8xf32>
    %11 = vector.shape_cast %10 : vector<1x1x8x8xf32> to vector<8x8xf32>
    %c0_18 = arith.constant 0 : index
    %c2 = arith.constant 2 : index
    %c0_19 = arith.constant 0 : index
    %c0_20 = arith.constant 0 : index
    %12 = vector.load %arg2[%c0_18, %c2, %c0_19, %c0_20] : memref<1x4x8x8xf32, #tpu.memory_space<vmem>>, vector<1x1x8x8xf32>
    %13 = vector.shape_cast %12 : vector<1x1x8x8xf32> to vector<8x8xf32>
    %c0_21 = arith.constant 0 : index
    %c3 = arith.constant 3 : index
    %c0_22 = arith.constant 0 : index
    %c0_23 = arith.constant 0 : index
    %14 = vector.load %arg2[%c0_21, %c3, %c0_22, %c0_23] : memref<1x4x8x8xf32, #tpu.memory_space<vmem>>, vector<1x1x8x8xf32>
    %15 = vector.shape_cast %14 : vector<1x1x8x8xf32> to vector<8x8xf32>
    %c0_24 = arith.constant 0 : index
    %16 = memref.load %arg6[%c0_24] : memref<32xf32, #tpu.memory_space<smem>>
    %17 = vector.broadcast %16 : f32 to vector<8x8xf32>
    %18 = arith.mulf %9, %17 : vector<8x8xf32>
    %c8 = arith.constant 8 : index
    %19 = memref.load %arg6[%c8] : memref<32xf32, #tpu.memory_space<smem>>
    %20 = vector.broadcast %19 : f32 to vector<8x8xf32>
    %21 = arith.mulf %11, %20 : vector<8x8xf32>
    %22 = arith.addf %18, %21 : vector<8x8xf32>
    %c16 = arith.constant 16 : index
    %23 = memref.load %arg6[%c16] : memref<32xf32, #tpu.memory_space<smem>>
    %24 = vector.broadcast %23 : f32 to vector<8x8xf32>
    %25 = arith.mulf %13, %24 : vector<8x8xf32>
    %26 = arith.addf %22, %25 : vector<8x8xf32>
    %c24 = arith.constant 24 : index
    %27 = memref.load %arg6[%c24] : memref<32xf32, #tpu.memory_space<smem>>
    %28 = vector.broadcast %27 : f32 to vector<8x8xf32>
    %29 = arith.mulf %15, %28 : vector<8x8xf32>
    %30 = arith.addf %26, %29 : vector<8x8xf32>
    %cst = arith.constant dense<0.000000e+00> : vector<8x16xf32>
    %31 = tpu.matmul %30, %1, %cst {dimension_numbers = #tpu.dot_dimension_numbers<[1], [0], [0], [1], [0, 0, 1, 1], [], []>} : vector<8x8xf32>, vector<8x16xf32>, vector<8x16xf32> -> vector<8x16xf32>
    %c1_25 = arith.constant 1 : index
    %32 = memref.load %arg6[%c1_25] : memref<32xf32, #tpu.memory_space<smem>>
    %33 = vector.broadcast %32 : f32 to vector<8x8xf32>
    %34 = arith.mulf %9, %33 : vector<8x8xf32>
    %c9 = arith.constant 9 : index
    %35 = memref.load %arg6[%c9] : memref<32xf32, #tpu.memory_space<smem>>
    %36 = vector.broadcast %35 : f32 to vector<8x8xf32>
    %37 = arith.mulf %11, %36 : vector<8x8xf32>
    %38 = arith.addf %34, %37 : vector<8x8xf32>
    %c17 = arith.constant 17 : index
    %39 = memref.load %arg6[%c17] : memref<32xf32, #tpu.memory_space<smem>>
    %40 = vector.broadcast %39 : f32 to vector<8x8xf32>
    %41 = arith.mulf %13, %40 : vector<8x8xf32>
    %42 = arith.addf %38, %41 : vector<8x8xf32>
    %c25 = arith.constant 25 : index
    %43 = memref.load %arg6[%c25] : memref<32xf32, #tpu.memory_space<smem>>
    %44 = vector.broadcast %43 : f32 to vector<8x8xf32>
    %45 = arith.mulf %15, %44 : vector<8x8xf32>
    %46 = arith.addf %42, %45 : vector<8x8xf32>
    %cst_26 = arith.constant dense<0.000000e+00> : vector<8x16xf32>
    %47 = tpu.matmul %46, %3, %cst_26 {dimension_numbers = #tpu.dot_dimension_numbers<[1], [0], [0], [1], [0, 0, 1, 1], [], []>} : vector<8x8xf32>, vector<8x16xf32>, vector<8x16xf32> -> vector<8x16xf32>
    %48 = arith.addf %31, %47 : vector<8x16xf32>
    %cst_27 = arith.constant dense<0.000000e+00> : vector<16x16xf32>
    %49 = tpu.matmul %5, %48, %cst_27 {dimension_numbers = #tpu.dot_dimension_numbers<[1], [0], [0], [1], [0, 0, 1, 1], [], []>} : vector<16x8xf32>, vector<8x16xf32>, vector<16x16xf32> -> vector<16x16xf32>
    %c2_28 = arith.constant 2 : index
    %50 = memref.load %arg6[%c2_28] : memref<32xf32, #tpu.memory_space<smem>>
    %51 = vector.broadcast %50 : f32 to vector<8x8xf32>
    %52 = arith.mulf %9, %51 : vector<8x8xf32>
    %c10 = arith.constant 10 : index
    %53 = memref.load %arg6[%c10] : memref<32xf32, #tpu.memory_space<smem>>
    %54 = vector.broadcast %53 : f32 to vector<8x8xf32>
    %55 = arith.mulf %11, %54 : vector<8x8xf32>
    %56 = arith.addf %52, %55 : vector<8x8xf32>
    %c18 = arith.constant 18 : index
    %57 = memref.load %arg6[%c18] : memref<32xf32, #tpu.memory_space<smem>>
    %58 = vector.broadcast %57 : f32 to vector<8x8xf32>
    %59 = arith.mulf %13, %58 : vector<8x8xf32>
    %60 = arith.addf %56, %59 : vector<8x8xf32>
    %c26 = arith.constant 26 : index
    %61 = memref.load %arg6[%c26] : memref<32xf32, #tpu.memory_space<smem>>
    %62 = vector.broadcast %61 : f32 to vector<8x8xf32>
    %63 = arith.mulf %15, %62 : vector<8x8xf32>
    %64 = arith.addf %60, %63 : vector<8x8xf32>
    %cst_29 = arith.constant dense<0.000000e+00> : vector<8x16xf32>
    %65 = tpu.matmul %64, %1, %cst_29 {dimension_numbers = #tpu.dot_dimension_numbers<[1], [0], [0], [1], [0, 0, 1, 1], [], []>} : vector<8x8xf32>, vector<8x16xf32>, vector<8x16xf32> -> vector<8x16xf32>
    %c3_30 = arith.constant 3 : index
    %66 = memref.load %arg6[%c3_30] : memref<32xf32, #tpu.memory_space<smem>>
    %67 = vector.broadcast %66 : f32 to vector<8x8xf32>
    %68 = arith.mulf %9, %67 : vector<8x8xf32>
    %c11 = arith.constant 11 : index
    %69 = memref.load %arg6[%c11] : memref<32xf32, #tpu.memory_space<smem>>
    %70 = vector.broadcast %69 : f32 to vector<8x8xf32>
    %71 = arith.mulf %11, %70 : vector<8x8xf32>
    %72 = arith.addf %68, %71 : vector<8x8xf32>
    %c19 = arith.constant 19 : index
    %73 = memref.load %arg6[%c19] : memref<32xf32, #tpu.memory_space<smem>>
    %74 = vector.broadcast %73 : f32 to vector<8x8xf32>
    %75 = arith.mulf %13, %74 : vector<8x8xf32>
    %76 = arith.addf %72, %75 : vector<8x8xf32>
    %c27 = arith.constant 27 : index
    %77 = memref.load %arg6[%c27] : memref<32xf32, #tpu.memory_space<smem>>
    %78 = vector.broadcast %77 : f32 to vector<8x8xf32>
    %79 = arith.mulf %15, %78 : vector<8x8xf32>
    %80 = arith.addf %76, %79 : vector<8x8xf32>
    %cst_31 = arith.constant dense<0.000000e+00> : vector<8x16xf32>
    %81 = tpu.matmul %80, %3, %cst_31 {dimension_numbers = #tpu.dot_dimension_numbers<[1], [0], [0], [1], [0, 0, 1, 1], [], []>} : vector<8x8xf32>, vector<8x16xf32>, vector<8x16xf32> -> vector<8x16xf32>
    %82 = arith.addf %65, %81 : vector<8x16xf32>
    %cst_32 = arith.constant dense<0.000000e+00> : vector<16x16xf32>
    %83 = tpu.matmul %7, %82, %cst_32 {dimension_numbers = #tpu.dot_dimension_numbers<[1], [0], [0], [1], [0, 0, 1, 1], [], []>} : vector<16x8xf32>, vector<8x16xf32>, vector<16x16xf32> -> vector<16x16xf32>
    %84 = arith.addf %49, %83 : vector<16x16xf32>
    %c0_33 = arith.constant 0 : index
    %c0_34 = arith.constant 0 : index
    %c0_35 = arith.constant 0 : index
    %c0_36 = arith.constant 0 : index
    %85 = vector.load %arg3[%c0_33, %c0_34, %c0_35, %c0_36] : memref<1x2x16x16xf32, #tpu.memory_space<vmem>>, vector<1x1x16x16xf32>
    %86 = vector.shape_cast %85 : vector<1x1x16x16xf32> to vector<16x16xf32>
    %87 = arith.addf %86, %84 : vector<16x16xf32>
    %c0_37 = arith.constant 0 : index
    %88 = memref.load %arg7[%c0_37] : memref<2xf32, #tpu.memory_space<smem>>
    %89 = vector.broadcast %88 : f32 to vector<16x16xf32>
    %90 = arith.addf %87, %89 : vector<16x16xf32>
    %c0_38 = arith.constant 0 : index
    %c0_39 = arith.constant 0 : index
    %c0_40 = arith.constant 0 : index
    %c0_41 = arith.constant 0 : index
    %91 = vector.load %arg8[%c0_38, %c0_39, %c0_40, %c0_41] : memref<1x2x16x16xf32, #tpu.memory_space<vmem>>, vector<1x1x16x16xf32>
    %92 = vector.shape_cast %91 : vector<1x1x16x16xf32> to vector<16x16xf32>
    %93 = vector.shape_cast %90 : vector<16x16xf32> to vector<1x1x16x16xf32>
    tpu.vector_store %arg8[%c0_38, %c0_39, %c0_40, %c0_41], %93 {strides = array<i32>} : memref<1x2x16x16xf32, #tpu.memory_space<vmem>>, vector<1x1x16x16xf32>,
    %c4 = arith.constant 4 : index
    %94 = memref.load %arg6[%c4] : memref<32xf32, #tpu.memory_space<smem>>
    %95 = vector.broadcast %94 : f32 to vector<8x8xf32>
    %96 = arith.mulf %9, %95 : vector<8x8xf32>
    %c12 = arith.constant 12 : index
    %97 = memref.load %arg6[%c12] : memref<32xf32, #tpu.memory_space<smem>>
    %98 = vector.broadcast %97 : f32 to vector<8x8xf32>
    %99 = arith.mulf %11, %98 : vector<8x8xf32>
    %100 = arith.addf %96, %99 : vector<8x8xf32>
    %c20 = arith.constant 20 : index
    %101 = memref.load %arg6[%c20] : memref<32xf32, #tpu.memory_space<smem>>
    %102 = vector.broadcast %101 : f32 to vector<8x8xf32>
    %103 = arith.mulf %13, %102 : vector<8x8xf32>
    %104 = arith.addf %100, %103 : vector<8x8xf32>
    %c28 = arith.constant 28 : index
    %105 = memref.load %arg6[%c28] : memref<32xf32, #tpu.memory_space<smem>>
    %106 = vector.broadcast %105 : f32 to vector<8x8xf32>
    %107 = arith.mulf %15, %106 : vector<8x8xf32>
    %108 = arith.addf %104, %107 : vector<8x8xf32>
    %cst_42 = arith.constant dense<0.000000e+00> : vector<8x16xf32>
    %109 = tpu.matmul %108, %1, %cst_42 {dimension_numbers = #tpu.dot_dimension_numbers<[1], [0], [0], [1], [0, 0, 1, 1], [], []>} : vector<8x8xf32>, vector<8x16xf32>, vector<8x16xf32> -> vector<8x16xf32>
    %c5 = arith.constant 5 : index
    %110 = memref.load %arg6[%c5] : memref<32xf32, #tpu.memory_space<smem>>
    %111 = vector.broadcast %110 : f32 to vector<8x8xf32>
    %112 = arith.mulf %9, %111 : vector<8x8xf32>
    %c13 = arith.constant 13 : index
    %113 = memref.load %arg6[%c13] : memref<32xf32, #tpu.memory_space<smem>>
    %114 = vector.broadcast %113 : f32 to vector<8x8xf32>
    %115 = arith.mulf %11, %114 : vector<8x8xf32>
    %116 = arith.addf %112, %115 : vector<8x8xf32>
    %c21 = arith.constant 21 : index
    %117 = memref.load %arg6[%c21] : memref<32xf32, #tpu.memory_space<smem>>
    %118 = vector.broadcast %117 : f32 to vector<8x8xf32>
    %119 = arith.mulf %13, %118 : vector<8x8xf32>
    %120 = arith.addf %116, %119 : vector<8x8xf32>
    %c29 = arith.constant 29 : index
    %121 = memref.load %arg6[%c29] : memref<32xf32, #tpu.memory_space<smem>>
    %122 = vector.broadcast %121 : f32 to vector<8x8xf32>
    %123 = arith.mulf %15, %122 : vector<8x8xf32>
    %124 = arith.addf %120, %123 : vector<8x8xf32>
    %cst_43 = arith.constant dense<0.000000e+00> : vector<8x16xf32>
    %125 = tpu.matmul %124, %3, %cst_43 {dimension_numbers = #tpu.dot_dimension_numbers<[1], [0], [0], [1], [0, 0, 1, 1], [], []>} : vector<8x8xf32>, vector<8x16xf32>, vector<8x16xf32> -> vector<8x16xf32>
    %126 = arith.addf %109, %125 : vector<8x16xf32>
    %cst_44 = arith.constant dense<0.000000e+00> : vector<16x16xf32>
    %127 = tpu.matmul %5, %126, %cst_44 {dimension_numbers = #tpu.dot_dimension_numbers<[1], [0], [0], [1], [0, 0, 1, 1], [], []>} : vector<16x8xf32>, vector<8x16xf32>, vector<16x16xf32> -> vector<16x16xf32>
    %c6 = arith.constant 6 : index
    %128 = memref.load %arg6[%c6] : memref<32xf32, #tpu.memory_space<smem>>
    %129 = vector.broadcast %128 : f32 to vector<8x8xf32>
    %130 = arith.mulf %9, %129 : vector<8x8xf32>
    %c14 = arith.constant 14 : index
    %131 = memref.load %arg6[%c14] : memref<32xf32, #tpu.memory_space<smem>>
    %132 = vector.broadcast %131 : f32 to vector<8x8xf32>
    %133 = arith.mulf %11, %132 : vector<8x8xf32>
    %134 = arith.addf %130, %133 : vector<8x8xf32>
    %c22 = arith.constant 22 : index
    %135 = memref.load %arg6[%c22] : memref<32xf32, #tpu.memory_space<smem>>
    %136 = vector.broadcast %135 : f32 to vector<8x8xf32>
    %137 = arith.mulf %13, %136 : vector<8x8xf32>
    %138 = arith.addf %134, %137 : vector<8x8xf32>
    %c30 = arith.constant 30 : index
    %139 = memref.load %arg6[%c30] : memref<32xf32, #tpu.memory_space<smem>>
    %140 = vector.broadcast %139 : f32 to vector<8x8xf32>
    %141 = arith.mulf %15, %140 : vector<8x8xf32>
    %142 = arith.addf %138, %141 : vector<8x8xf32>
    %cst_45 = arith.constant dense<0.000000e+00> : vector<8x16xf32>
    %143 = tpu.matmul %142, %1, %cst_45 {dimension_numbers = #tpu.dot_dimension_numbers<[1], [0], [0], [1], [0, 0, 1, 1], [], []>} : vector<8x8xf32>, vector<8x16xf32>, vector<8x16xf32> -> vector<8x16xf32>
    %c7 = arith.constant 7 : index
    %144 = memref.load %arg6[%c7] : memref<32xf32, #tpu.memory_space<smem>>
    %145 = vector.broadcast %144 : f32 to vector<8x8xf32>
    %146 = arith.mulf %9, %145 : vector<8x8xf32>
    %c15 = arith.constant 15 : index
    %147 = memref.load %arg6[%c15] : memref<32xf32, #tpu.memory_space<smem>>
    %148 = vector.broadcast %147 : f32 to vector<8x8xf32>
    %149 = arith.mulf %11, %148 : vector<8x8xf32>
    %150 = arith.addf %146, %149 : vector<8x8xf32>
    %c23 = arith.constant 23 : index
    %151 = memref.load %arg6[%c23] : memref<32xf32, #tpu.memory_space<smem>>
    %152 = vector.broadcast %151 : f32 to vector<8x8xf32>
    %153 = arith.mulf %13, %152 : vector<8x8xf32>
    %154 = arith.addf %150, %153 : vector<8x8xf32>
    %c31 = arith.constant 31 : index
    %155 = memref.load %arg6[%c31] : memref<32xf32, #tpu.memory_space<smem>>
    %156 = vector.broadcast %155 : f32 to vector<8x8xf32>
    %157 = arith.mulf %15, %156 : vector<8x8xf32>
    %158 = arith.addf %154, %157 : vector<8x8xf32>
    %cst_46 = arith.constant dense<0.000000e+00> : vector<8x16xf32>
    %159 = tpu.matmul %158, %3, %cst_46 {dimension_numbers = #tpu.dot_dimension_numbers<[1], [0], [0], [1], [0, 0, 1, 1], [], []>} : vector<8x8xf32>, vector<8x16xf32>, vector<8x16xf32> -> vector<8x16xf32>
    %160 = arith.addf %143, %159 : vector<8x16xf32>
    %cst_47 = arith.constant dense<0.000000e+00> : vector<16x16xf32>
    %161 = tpu.matmul %7, %160, %cst_47 {dimension_numbers = #tpu.dot_dimension_numbers<[1], [0], [0], [1], [0, 0, 1, 1], [], []>} : vector<16x8xf32>, vector<8x16xf32>, vector<16x16xf32> -> vector<16x16xf32>
    %162 = arith.addf %127, %161 : vector<16x16xf32>
    %c0_48 = arith.constant 0 : index
    %c1_49 = arith.constant 1 : index
    %c0_50 = arith.constant 0 : index
    %c0_51 = arith.constant 0 : index
    %163 = vector.load %arg3[%c0_48, %c1_49, %c0_50, %c0_51] : memref<1x2x16x16xf32, #tpu.memory_space<vmem>>, vector<1x1x16x16xf32>
    %164 = vector.shape_cast %163 : vector<1x1x16x16xf32> to vector<16x16xf32>
    %165 = arith.addf %164, %162 : vector<16x16xf32>
    %c1_52 = arith.constant 1 : index
    %166 = memref.load %arg7[%c1_52] : memref<2xf32, #tpu.memory_space<smem>>
    %167 = vector.broadcast %166 : f32 to vector<16x16xf32>
    %168 = arith.addf %165, %167 : vector<16x16xf32>
    %c0_53 = arith.constant 0 : index
    %c1_54 = arith.constant 1 : index
    %c0_55 = arith.constant 0 : index
    %c0_56 = arith.constant 0 : index
    %169 = vector.load %arg8[%c0_53, %c1_54, %c0_55, %c0_56] : memref<1x2x16x16xf32, #tpu.memory_space<vmem>>, vector<1x1x16x16xf32>
    %170 = vector.shape_cast %169 : vector<1x1x16x16xf32> to vector<16x16xf32>
    %171 = vector.shape_cast %168 : vector<16x16xf32> to vector<1x1x16x16xf32>
    tpu.vector_store %arg8[%c0_53, %c1_54, %c0_55, %c0_56], %171 {strides = array<i32>} : memref<1x2x16x16xf32, #tpu.memory_space<vmem>>, vector<1x1x16x16xf32>,
    return
  }
  func.func @transform_0(%arg0: i32, %arg1: i32) -> (i32, i32, i32, i32) {
    %c0_i32 = arith.constant 0 : i32
    %c0_i32_0 = arith.constant 0 : i32
    %c0_i32_1 = arith.constant 0 : i32
    return %arg0, %c0_i32, %arg1, %c0_i32_0 : i32, i32, i32, i32
  }
  func.func @transform_1(%arg0: i32, %arg1: i32) -> (i32, i32, i32, i32) {
    %c0_i32 = arith.constant 0 : i32
    %c0_i32_0 = arith.constant 0 : i32
    %c0_i32_1 = arith.constant 0 : i32
    return %arg0, %c0_i32, %arg1, %c0_i32_0 : i32, i32, i32, i32
  }
  func.func @transform_2(%arg0: i32, %arg1: i32) -> (i32, i32, i32) {
    %c0_i32 = arith.constant 0 : i32
    %c0_i32_0 = arith.constant 0 : i32
    %c0_i32_1 = arith.constant 0 : i32
    %c0_i32_2 = arith.constant 0 : i32
    return %c0_i32, %c0_i32_0, %c0_i32_1 : i32, i32, i32
  }
  func.func @transform_3(%arg0: i32, %arg1: i32) -> (i32, i32, i32) {
    %c0_i32 = arith.constant 0 : i32
    %c0_i32_0 = arith.constant 0 : i32
    %c0_i32_1 = arith.constant 0 : i32
    %c0_i32_2 = arith.constant 0 : i32
    return %c0_i32, %c0_i32_0, %c0_i32_1 : i32, i32, i32
  }
  func.func @transform_4(%arg0: i32, %arg1: i32) -> i32 {
    %c0_i32 = arith.constant 0 : i32
    %c0_i32_0 = arith.constant 0 : i32
    return %c0_i32 : i32
  }
  func.func @transform_5(%arg0: i32, %arg1: i32) -> i32 {
    %c0_i32 = arith.constant 0 : i32
    %c0_i32_0 = arith.constant 0 : i32
    return %c0_i32 : i32
  }
  func.func @transform_6(%arg0: i32, %arg1: i32) -> (i32, i32, i32, i32) {
    %c0_i32 = arith.constant 0 : i32
    %c0_i32_0 = arith.constant 0 : i32
    %c0_i32_1 = arith.constant 0 : i32
    return %arg0, %c0_i32, %arg1, %c0_i32_0 : i32, i32, i32, i32
  }
}

</mosaic_0001>

<llo_original>
// kernel: up_forward.1
$region0: #{up_forward.1}
  #allocation0 [shape = 'u32[]', space=smem, size = 0x4, offset = 0x4, fixed_abs, tag = 'smem constant byte address 0x4 - core index']
  #allocation1 [shape = 'u32[72,128]{1,0:T(1,128)}', space=vmem, size = 0x9000, scoped, tag = 'internal scratch']
  %s0 = inlined_call_operand.vmem [shape: f32[2,4,8,8], index: 0, kind: input, shape index: {}]
  %s1 = inlined_call_operand.hbm [shape: f32[2,2,16,16], index: 1, kind: input, shape index: {}, may-alias: {1,6}]
  %s2 = inlined_call_operand.vmem [shape: f32[2,8,16], index: 2, kind: input, shape index: {}]
  %s3 = inlined_call_operand.vmem [shape: f32[2,16,8], index: 3, kind: input, shape index: {}]
  %s4 = inlined_call_operand.vmem [shape: f32[32], index: 4, kind: input, shape index: {}]
  %s5 = inlined_call_operand.vmem [shape: f32[2], index: 5, kind: input, shape index: {}]
  %s6 = inlined_call_operand.hbm [shape: f32[2,2,16,16], index: 6, kind: output, shape index: {}, may-alias: {1,6}]
  %s7 = sld [smem:[#allocation0]]
  $region69: #{up_forward.1} parent=0
    _
  %s9 = ssub.s32 1, %s7
  %s10 = scalar_select 0, %s9, %s7
  $region1: #{up_forward.1} parent=0
    #allocation2 [shape = 'u8[32768]{0}', space=vmem, size = 0x8000, scoped, tag = 'input window, operand 1']
    #allocation3 [shape = 's32[2]{0}', space=sflag, size = 0x8, scoped, tag = 'scoped memory for up_forward.1']
    #allocation4 [shape = 's32[2]{0}', space=sflag, size = 0x8, scoped, tag = 'scoped memory for up_forward.1']
    #allocation5 [shape = 's32[2]{0}', space=sflag, size = 0x8, scoped, tag = 'scoped memory for up_forward.1']
    #allocation6 [shape = 'u8[512]{0}', space=smem, size = 0x200, scoped, tag = 'input window, operand 4, single buffered']
    #allocation7 [shape = 'u8[512]{0}', space=smem, size = 0x200, scoped, tag = 'input window, operand 5, single buffered']
    #allocation8 [shape = 's32[1]{0}', space=sflag, size = 0x4, scoped, tag = 'scoped memory for up_forward.1']
    #allocation9 [shape = 'u8[32768]{0}', space=vmem, size = 0x8000, scoped, tag = 'output window, operand 0']
    %11 = vsyncpa [#allocation3], 0
    %s12 = scalar_lea.sflag [#allocation3], 1
    %13 = vsyncpa %s12, 0
    %14 = vsyncpa [#allocation5], 0
    %15 = vsyncpa [#allocation8], 0
    %16 = vsyncpa [#allocation4], 0
    %s17 = scalar_lea.sflag [#allocation4], 1
    %18 = vsyncpa %s17, 0
    loop: start=0, step=1, limit=4
    $region2: #{up_forward.1} parent=1 // loop_pre_header
      _
    $region3: #{up_forward.1} parent=1 // loop_header
      %s20 = sphi 0, %s24
      %p21 = scmp.ge.s32.totalorder %s20, 4
      %s27 = sphi 0, %s39
      %s28 = sphi 0, %s35
      %s29 = sphi 0, %s27
      %s30 = sphi 0, %s28
      %s31 = sphi 0, %s29
      %s32 = sphi 0, %s30
      %s44 = sphi 0, %s46
      %s47 = sphi 0, %s44
      %s48 = sphi 0, %s47
      %s64 = sphi 0, %s48
      %s72 = sphi 0, %s74
      %s75 = sphi 0, %s72
      %s76 = sphi 0, %s75
      %s92 = sphi 0, %s76
      %s96 = sphi 0, %s96
      %s98 = sphi 0, %s96
      %s99 = sphi 0, %s98
      %s113 = sphi 0, %s99
      %s117 = sphi 0, %s117
      %s119 = sphi 0, %s117
      %s120 = sphi 0, %s119
      %s134 = sphi 0, %s120
      %s138 = sphi 0, %s138
      %s140 = sphi 0, %s138
      %s141 = sphi 0, %s140
      %s155 = sphi 0, %s141
      %s159 = sphi 0, %s159
      %s161 = sphi 0, %s159
      %s162 = sphi 0, %s161
      %s176 = sphi 0, %s162
      %s184 = sphi 0, %s186
      %s187 = sphi 0, %s184
      %s188 = sphi 0, %s187
      %s204 = sphi 0, %s188
    $region4: #{up_forward.1} parent=1 // loop_header_branch
      %23 = sbr.rel (%p21) target = $region8
    $region5: #{up_forward.1} parent=1 // loop_body
      %s25 = ssub.s32 %s20, 1
      %s26 = ssub.s32 %s20, 2
      %s33 = sadd.s32 1, %s28
      %p34 = scmp.ge.s32.totalorder %s33, 1
      %s35 = scalar_select %p34, 0, %s33
      %s36 = sadd.s32 1, %s27
      %s37 = scalar_select %p34, %s36, %s27
      %p38 = scmp.ge.s32.totalorder %s37, 2
      %s39 = scalar_select %p38, 0, %s37
      %s40 = ssub.s32 %s27, %s39
      %s41 = ssub.s32 %s28, %s35
      %s42 = sor.u32 %s40, %s41
      %p43 = scmp.eq.s32.totalorder %s42, 0
      %s45 = sadd.s32 %s44, 1
      %s46 = scalar_select %p43, %s44, %s45
      %p49 = pneg %p43
      %p50 = scmp.eq.s32.totalorder %s20, 1
      %p51 = por %p49, %p50
      %p52 = scmp.ne.s32.totalorder %s44, %s47
      %p53 = scmp.eq.s32.totalorder %s20, 0
      %p54 = por %p52, %p53
      %p55 = scmp.ne.s32.totalorder %s44, %s47
      %p56 = scmp.eq.s32.totalorder %s25, 1
      %p57 = por %p55, %p56
      %p58 = scmp.ne.s32.totalorder %s47, %s48
      %p59 = scmp.eq.s32.totalorder %s25, 0
      %p60 = por %p58, %p59
      %p61 = scmp.ne.s32.totalorder %s47, %s48
      %p62 = scmp.eq.s32.totalorder %s26, 1
      %p63 = por %p61, %p62
      %p65 = scmp.ne.s32.totalorder %s48, %s64
      %p66 = scmp.eq.s32.totalorder %s26, 0
      %p67 = por %p65, %p66
      %s68 = ssub.s32 %s27, %s39
      %s69 = ssub.s32 %s28, %s35
      %s70 = sor.u32 %s68, %s69
      %p71 = scmp.eq.s32.totalorder %s70, 0
      %s73 = sadd.s32 %s72, 1
      %s74 = scalar_select %p71, %s72, %s73
      %p77 = pneg %p71
      %p78 = scmp.eq.s32.totalorder %s20, 1
      %p79 = por %p77, %p78
      %p80 = scmp.ne.s32.totalorder %s72, %s75
      %p81 = scmp.eq.s32.totalorder %s20, 0
      %p82 = por %p80, %p81
      %p83 = scmp.ne.s32.totalorder %s72, %s75
      %p84 = scmp.eq.s32.totalorder %s25, 1
      %p85 = por %p83, %p84
      %p86 = scmp.ne.s32.totalorder %s75, %s76
      %p87 = scmp.eq.s32.totalorder %s25, 0
      %p88 = por %p86, %p87
      %p89 = scmp.ne.s32.totalorder %s75, %s76
      %p90 = scmp.eq.s32.totalorder %s26, 1
      %p91 = por %p89, %p90
      %p93 = scmp.ne.s32.totalorder %s76, %s92
      %p94 = scmp.eq.s32.totalorder %s26, 0
      %p95 = por %p93, %p94
      %s97 = sadd.s32 %s96, 1
      %p100 = scmp.eq.s32.totalorder %s20, 1
      %p101 = scmp.ne.s32.totalorder %s96, %s98
      %p102 = scmp.eq.s32.totalorder %s20, 0
      %p103 = por %p101, %p102
      %p104 = scmp.ne.s32.totalorder %s96, %s98
      %p105 = scmp.eq.s32.totalorder %s25, 1
      %p106 = por %p104, %p105
      %p107 = scmp.ne.s32.totalorder %s98, %s99
      %p108 = scmp.eq.s32.totalorder %s25, 0
      %p109 = por %p107, %p108
      %p110 = scmp.ne.s32.totalorder %s98, %s99
      %p111 = scmp.eq.s32.totalorder %s26, 1
      %p112 = por %p110, %p111
      %p114 = scmp.ne.s32.totalorder %s99, %s113
      %p115 = scmp.eq.s32.totalorder %s26, 0
      %p116 = por %p114, %p115
      %s118 = sadd.s32 %s117, 1
      %p121 = scmp.eq.s32.totalorder %s20, 1
      %p122 = scmp.ne.s32.totalorder %s117, %s119
      %p123 = scmp.eq.s32.totalorder %s20, 0
      %p124 = por %p122, %p123
      %p125 = scmp.ne.s32.totalorder %s117, %s119
      %p126 = scmp.eq.s32.totalorder %s25, 1
      %p127 = por %p125, %p126
      %p128 = scmp.ne.s32.totalorder %s119, %s120
      %p129 = scmp.eq.s32.totalorder %s25, 0
      %p130 = por %p128, %p129
      %p131 = scmp.ne.s32.totalorder %s119, %s120
      %p132 = scmp.eq.s32.totalorder %s26, 1
      %p133 = por %p131, %p132
      %p135 = scmp.ne.s32.totalorder %s120, %s134
      %p136 = scmp.eq.s32.totalorder %s26, 0
      %p137 = por %p135, %p136
      %s139 = sadd.s32 %s138, 1
      %p142 = scmp.eq.s32.totalorder %s20, 1
      %p143 = scmp.ne.s32.totalorder %s138, %s140
      %p144 = scmp.eq.s32.totalorder %s20, 0
      %p145 = por %p143, %p144
      %p146 = scmp.ne.s32.totalorder %s138, %s140
      %p147 = scmp.eq.s32.totalorder %s25, 1
      %p148 = por %p146, %p147
      %p149 = scmp.ne.s32.totalorder %s140, %s141
      %p150 = scmp.eq.s32.totalorder %s25, 0
      %p151 = por %p149, %p150
      %p152 = scmp.ne.s32.totalorder %s140, %s141
      %p153 = scmp.eq.s32.totalorder %s26, 1
      %p154 = por %p152, %p153
      %p156 = scmp.ne.s32.totalorder %s141, %s155
      %p157 = scmp.eq.s32.totalorder %s26, 0
      %p158 = por %p156, %p157
      %s160 = sadd.s32 %s159, 1
      %p163 = scmp.eq.s32.totalorder %s20, 1
      %p164 = scmp.ne.s32.totalorder %s159, %s161
      %p165 = scmp.eq.s32.totalorder %s20, 0
      %p166 = por %p164, %p165
      %p167 = scmp.ne.s32.totalorder %s159, %s161
      %p168 = scmp.eq.s32.totalorder %s25, 1
      %p169 = por %p167, %p168
      %p170 = scmp.ne.s32.totalorder %s161, %s162
      %p171 = scmp.eq.s32.totalorder %s25, 0
      %p172 = por %p170, %p171
      %p173 = scmp.ne.s32.totalorder %s161, %s162
      %p174 = scmp.eq.s32.totalorder %s26, 1
      %p175 = por %p173, %p174
      %p177 = scmp.ne.s32.totalorder %s162, %s176
      %p178 = scmp.eq.s32.totalorder %s26, 0
      %p179 = por %p177, %p178
      %s180 = ssub.s32 %s27, %s39
      %s181 = ssub.s32 %s28, %s35
      %s182 = sor.u32 %s180, %s181
      %p183 = scmp.eq.s32.totalorder %s182, 0
      %s185 = sadd.s32 %s184, 1
      %s186 = scalar_select %p183, %s184, %s185
      %p189 = pneg %p183
      %p190 = scmp.eq.s32.totalorder %s20, 1
      %p191 = por %p189, %p190
      %p192 = scmp.ne.s32.totalorder %s184, %s187
      %p193 = scmp.eq.s32.totalorder %s20, 0
      %p194 = por %p192, %p193
      %p195 = scmp.ne.s32.totalorder %s184, %s187
      %p196 = scmp.eq.s32.totalorder %s25, 1
      %p197 = por %p195, %p196
      %p198 = scmp.ne.s32.totalorder %s187, %s188
      %p199 = scmp.eq.s32.totalorder %s25, 0
      %p200 = por %p198, %p199
      %p201 = scmp.ne.s32.totalorder %s187, %s188
      %p202 = scmp.eq.s32.totalorder %s26, 1
      %p203 = por %p201, %p202
      %p205 = scmp.ne.s32.totalorder %s188, %s204
      %p206 = scmp.eq.s32.totalorder %s26, 0
      %p207 = por %p205, %p206
      %p208 = scmp.le.s32.totalorder 1, %s20
      %p209 = scmp.lt.s32.totalorder %s20, 3
      %p210 = pnand %p208, %p209
      %p211 = pneg %p210
      // Predicated region
      $region9: #{up_forward.1} parent=5 // pred_check
        _
      $region10: #{up_forward.1} parent=5 // pred_check_branch
        %213 = sbr.rel (%p210) target = $region12
      $region11: #{up_forward.1} parent=5 // pred_region
        %s214 = ssub.s32 %s20, 1
        // Predicated region
        $region13: #{up_forward.1} parent=11 // pred_check
          %p215 = pneg %p109
        $region14: #{up_forward.1} parent=11 // pred_check_branch
          %217 = sbr.rel (%p215) target = $region16
        $region15: #{up_forward.1} parent=11 // pred_region
          _
        $region16: #{up_forward.1} parent=11 // pred_fallthru
          _
        // Predicated region
        $region17: #{up_forward.1} parent=11 // pred_check
          %p218 = pneg %p130
        $region18: #{up_forward.1} parent=11 // pred_check_branch
          %220 = sbr.rel (%p218) target = $region20
        $region19: #{up_forward.1} parent=11 // pred_region
          _
        $region20: #{up_forward.1} parent=11 // pred_fallthru
          _
        // Predicated region
        $region21: #{up_forward.1} parent=11 // pred_check
          %p221 = pneg %p151
        $region22: #{up_forward.1} parent=11 // pred_check_branch
          %223 = sbr.rel (%p221) target = $region24
        $region23: #{up_forward.1} parent=11 // pred_region
          %225 = vsyncadd [#allocation5], 0
          %s227 = sshll.u32 %s4, 4
          %s228 = int_to_ptr.vmem [resolvable:$true] %s227
          %230 = dma.vmem_to_smem %s228, 16, [#allocation6], [#allocation5]
        $region24: #{up_forward.1} parent=11 // pred_fallthru
          _
        // Predicated region
        $region25: #{up_forward.1} parent=11 // pred_check
          %p231 = pneg %p172
        $region26: #{up_forward.1} parent=11 // pred_check_branch
          %233 = sbr.rel (%p231) target = $region28
        $region27: #{up_forward.1} parent=11 // pred_region
          %235 = vsyncadd [#allocation8], 0
          %s237 = sshll.u32 %s5, 4
          %s238 = int_to_ptr.vmem [resolvable:$true] %s237
          %240 = dma.vmem_to_smem %s238, 16, [#allocation7], [#allocation8]
        $region28: #{up_forward.1} parent=11 // pred_fallthru
          _
      $region12: #{up_forward.1} parent=5 // pred_fallthru
        _
      %p241 = scmp.lt.s32.totalorder %s20, 2
      // Predicated region
      $region29: #{up_forward.1} parent=5 // pred_check
        %p242 = pneg %p241
      $region30: #{up_forward.1} parent=5 // pred_check_branch
        %244 = sbr.rel (%p242) target = $region32
      $region31: #{up_forward.1} parent=5 // pred_region
        // Predicated region
        $region33: #{up_forward.1} parent=31 // pred_check
          %p245 = pneg %p54
        $region34: #{up_forward.1} parent=31 // pred_check_branch
          %247 = sbr.rel (%p245) target = $region36
        $region35: #{up_forward.1} parent=31 // pred_region
          %p248 = scmp.lt.s32.totalorder %s27, 1
          %s249 = scalar_select %p248, %s27, 1
          %p250 = scmp.lt.s32.totalorder %s28, 0
          %s251 = scalar_select %p250, %s28, 0
          %s252 = smul.addr %s249, 4
          %s253 = sadd.s32 %s251, %s252
          %s254 = smul.addr %s253, 8
          %s255 = scalar_lea.vmem %s0, %s254
        $region36: #{up_forward.1} parent=31 // pred_fallthru
          _
        // Predicated region
        $region37: #{up_forward.1} parent=31 // pred_check
          %p256 = pneg %p82
        $region38: #{up_forward.1} parent=31 // pred_check_branch
          %258 = sbr.rel (%p256) target = $region40
        $region39: #{up_forward.1} parent=31 // pred_region
          %s259 = sand.u32 %s72, 1
          %s260 = scalar_lea.sflag [#allocation3], %s259
          %s261 = sand.u32 %s72, 1
          %s262 = smul.addr %s261, 32
          %s263 = scalar_lea.vmem [#allocation2], %s262
          %s264 = smul.u32 2, %s28
          %266 = vsyncadd %s260, 0
          %s267 = smul.addr %s27, 4
          %s268 = sadd.s32 %s264, %s267
          %s269 = smul.addr %s268, 8
          %s270 = scalar_lea.hbm %s1, %s269
          %s271 = sshll.u32 %s270, 4
          %s272 = int_to_ptr.hbm [resolvable:$true] %s271
          %s273 = sshll.u32 %s263, 4
          %s274 = int_to_ptr.vmem [resolvable:$true] %s273
          %279 = dma.hbm_to_vmem [thread:$0]  %s272, 512, %s274, %s260, 128, 128, 8
        $region40: #{up_forward.1} parent=31 // pred_fallthru
          _
      $region32: #{up_forward.1} parent=5 // pred_fallthru
        _
      %p280 = scmp.le.s32.totalorder 1, %s20
      %p281 = scmp.lt.s32.totalorder %s20, 3
      %p282 = pnand %p280, %p281
      %p283 = pneg %p282
      // Predicated region
      $region41: #{up_forward.1} parent=5 // pred_check
        _
      $region42: #{up_forward.1} parent=5 // pred_check_branch
        %285 = sbr.rel (%p282) target = $region44
      $region43: #{up_forward.1} parent=5 // pred_region
        %s286 = ssub.s32 %s20, 1
        %s287 = sand.u32 %s75, 1
        %s288 = scalar_lea.sflag [#allocation3], %s287
        %s289 = sand.u32 %s75, 1
        %s290 = smul.addr %s289, 32
        %s291 = scalar_lea.vmem [#allocation2], %s290
        // Predicated region
        $region45: #{up_forward.1} parent=43 // pred_check
          %p292 = pneg %p88
        $region46: #{up_forward.1} parent=43 // pred_check_branch
          %294 = sbr.rel (%p292) target = $region48
        $region47: #{up_forward.1} parent=43 // pred_region
          %296 = dma.done %s288, 512
        $region48: #{up_forward.1} parent=43 // pred_fallthru
          _
        // Predicated region
        $region49: #{up_forward.1} parent=43 // pred_check
          %p297 = pneg %p151
        $region50: #{up_forward.1} parent=43 // pred_check_branch
          %299 = sbr.rel (%p297) target = $region52
        $region51: #{up_forward.1} parent=43 // pred_region
          %301 = dma.done [#allocation5], 16
        $region52: #{up_forward.1} parent=43 // pred_fallthru
          _
        // Predicated region
        $region53: #{up_forward.1} parent=43 // pred_check
          %p302 = pneg %p172
        $region54: #{up_forward.1} parent=43 // pred_check_branch
          %304 = sbr.rel (%p302) target = $region56
        $region55: #{up_forward.1} parent=43 // pred_region
          %306 = dma.done [#allocation8], 16
        $region56: #{up_forward.1} parent=43 // pred_fallthru
          _
        %307 = sfence
        %p308 = scmp.lt.s32.totalorder %s29, 1
        %s309 = scalar_select %p308, %s29, 1
        %p310 = scmp.lt.s32.totalorder %s30, 0
        %s311 = scalar_select %p310, %s30, 0
        %s312 = smul.addr %s309, 4
        %s313 = sadd.s32 %s311, %s312
        %s314 = smul.addr %s313, 8
        %s315 = scalar_lea.vmem %s0, %s314
        %p316 = pneg %p60
        %p317 = pneg %p57
        %s318 = sand.u32 %s75, 1
        %s319 = scalar_lea.sflag [#allocation3], %s318
        %s320 = sand.u32 %s75, 1
        %s321 = smul.addr %s320, 32
        %s322 = scalar_lea.vmem [#allocation2], %s321
        %p323 = pneg %p88
        %p324 = pneg %p85
        %p325 = pneg %p109
        %p326 = pneg %p106
        %p327 = pneg %p130
        %p328 = pneg %p127
        %p329 = pneg %p151
        %p330 = pneg %p148
        %p331 = pneg %p172
        %p332 = pneg %p169
        %p333 = pneg %p200
        %p334 = pneg %p197
        %s335 = sand.u32 %s187, 1
        %s336 = scalar_lea.sflag [#allocation4], %s335
        %s337 = sand.u32 %s187, 1
        %s338 = smul.addr %s337, 32
        %s339 = scalar_lea.vmem [#allocation9], %s338
        %p340 = scmp.lt.s32.totalorder %s29, 1
        %s341 = scalar_select %p340, %s29, 1
        %p342 = scmp.lt.s32.totalorder %s30, 0
        %s343 = scalar_select %p342, %s30, 0
        %s344 = smul.addr %s341, 4
        %s345 = sadd.s32 %s343, %s344
        %s346 = smul.addr %s345, 8
        %s347 = scalar_lea.vmem %s0, %s346
        %s348 = smul.u32 2, %s30
        %s349 = smul.u32 2, %s30
        %v350 = vld [vmem:[%s2] sm:$0xff]
        %s351 = scalar_lea.vmem %s2, 8
        %v352 = vld [vmem:[%s351] sm:$0xff]
        %v353 = vld [vmem:[%s3] sm:$0xff]
        %v354 = vld [vmem:[%s3 + $0x8] sm:$0xff]
        %s355 = scalar_lea.vmem %s3, 16
        %v356 = vld [vmem:[%s355] sm:$0xff]
        %v357 = vld [vmem:[%s355 + $0x8] sm:$0xff]
        %v358 = vld [vmem:[%s347] sm:$0xff]
        %s359 = scalar_lea.vmem %s347, 8
        %v360 = vld [vmem:[%s359] sm:$0xff]
        %s361 = scalar_lea.vmem %s347, 16
        %v362 = vld [vmem:[%s361] sm:$0xff]
        %s363 = scalar_lea.vmem %s347, 24
        %v364 = vld [vmem:[%s363] sm:$0xff]
        %s365 = sld [smem:[#allocation6]]
        %v366 = vstv %s365
        %v367 = vmul.f32 %v358, %v366
        %s368 = sld [smem:[#allocation6 + $0x8]]
        %v369 = vstv %s368
        %v370 = vmul.f32 %v360, %v369
        %v371 = vadd.f32 %v367, %v370
        %s372 = sld [smem:[#allocation6 + $0x10]]
        %v373 = vstv %s372
        %v374 = vmul.f32 %v362, %v373
        %v375 = vadd.f32 %v371, %v374
        %s376 = sld [smem:[#allocation6 + $0x18]]
        %v377 = vstv %s376
        %v378 = vmul.f32 %v364, %v377
        %v379 = vadd.f32 %v375, %v378
        %s380 = sld [smem:[#allocation6 + $0x1]]
        %v381 = vstv %s380
        %v382 = vmul.f32 %v358, %v381
        %s383 = sld [smem:[#allocation6 + $0x9]]
        %v384 = vstv %s383
        %v385 = vmul.f32 %v360, %v384
        %v386 = vadd.f32 %v382, %v385
        %s387 = sld [smem:[#allocation6 + $0x11]]
        %v388 = vstv %s387
        %v389 = vmul.f32 %v362, %v388
        %v390 = vadd.f32 %v386, %v389
        %s391 = sld [smem:[#allocation6 + $0x19]]
        %v392 = vstv %s391
        %v393 = vmul.f32 %v364, %v392
        %v394 = vadd.f32 %v390, %v393
        %vm395 = vcmask 64512
        %v397 = vsel %vm395, %v394, 0
        %399 = vmatpush.msra.mxu0 0.0
        %400 = vmatpush.msra.mxu0 0.0
        %401 = vmatpush.msra.mxu0 0.0
        %402 = vmatpush.msra.mxu0 0.0
        %403 = vmatpush.msra.mxu0 0.0
        %404 = vmatpush.msra.mxu0 0.0
        %405 = vmatpush.msra.mxu0 0.0
        %406 = vmatpush.msra.mxu0 0.0
        %407 = vmatpush.msra.mxu0 0.0
        %408 = vmatpush.msra.mxu0 0.0
        %409 = vmatpush.msra.mxu0 0.0
        %410 = vmatpush.msra.mxu0 0.0
        %411 = vmatpush.msra.mxu0 0.0
        %412 = vmatpush.msra.mxu0 0.0
        %413 = vmatpush.msra.mxu0 0.0
        %414 = vmatpush.msra.mxu0 %v352
        %415 = vmatmul.f32.gmra.mxu0 %v397
        %v416 = vpop.f32.mrf.mxu0
        %v417 = vadd.f32 0.0, %v416
        %418 = vdwg.mxu0
        %v420 = vsel %vm395, %v379, 0
        %422 = vmatpush.msra.mxu0 0.0
        %423 = vmatpush.msra.mxu0 0.0
        %424 = vmatpush.msra.mxu0 0.0
        %425 = vmatpush.msra.mxu0 0.0
        %426 = vmatpush.msra.mxu0 0.0
        %427 = vmatpush.msra.mxu0 0.0
        %428 = vmatpush.msra.mxu0 0.0
        %429 = vmatpush.msra.mxu0 0.0
        %430 = vmatpush.msra.mxu0 0.0
        %431 = vmatpush.msra.mxu0 0.0
        %432 = vmatpush.msra.mxu0 0.0
        %433 = vmatpush.msra.mxu0 0.0
        %434 = vmatpush.msra.mxu0 0.0
        %435 = vmatpush.msra.mxu0 0.0
        %436 = vmatpush.msra.mxu0 0.0
        %437 = vmatpush.msra.mxu0 %v350
        %438 = vmatmul.f32.gmra.mxu0 %v420
        %v439 = vpop.f32.mrf.mxu0
        %v440 = vadd.f32 %v417, %v439
        %441 = vdwg.mxu0
        %s442 = sld [smem:[#allocation6 + $0x2]]
        %v443 = vstv %s442
        %v444 = vmul.f32 %v358, %v443
        %s445 = sld [smem:[#allocation6 + $0xa]]
        %v446 = vstv %s445
        %v447 = vmul.f32 %v360, %v446
        %v448 = vadd.f32 %v444, %v447
        %s449 = sld [smem:[#allocation6 + $0x12]]
        %v450 = vstv %s449
        %v451 = vmul.f32 %v362, %v450
        %v452 = vadd.f32 %v448, %v451
        %s453 = sld [smem:[#allocation6 + $0x1a]]
        %v454 = vstv %s453
        %v455 = vmul.f32 %v364, %v454
        %v456 = vadd.f32 %v452, %v455
        %s457 = sld [smem:[#allocation6 + $0x3]]
        %v458 = vstv %s457
        %v459 = vmul.f32 %v358, %v458
        %s460 = sld [smem:[#allocation6 + $0xb]]
        %v461 = vstv %s460
        %v462 = vmul.f32 %v360, %v461
        %v463 = vadd.f32 %v459, %v462
        %s464 = sld [smem:[#allocation6 + $0x13]]
        %v465 = vstv %s464
        %v466 = vmul.f32 %v362, %v465
        %v467 = vadd.f32 %v463, %v466
        %s468 = sld [smem:[#allocation6 + $0x1b]]
        %v469 = vstv %s468
        %v470 = vmul.f32 %v364, %v469
        %v471 = vadd.f32 %v467, %v470
        %v473 = vsel %vm395, %v471, 0
        %475 = vmatpush.msra.mxu0 0.0
        %476 = vmatpush.msra.mxu0 0.0
        %477 = vmatpush.msra.mxu0 0.0
        %478 = vmatpush.msra.mxu0 0.0
        %479 = vmatpush.msra.mxu0 0.0
        %480 = vmatpush.msra.mxu0 0.0
        %481 = vmatpush.msra.mxu0 0.0
        %482 = vmatpush.msra.mxu0 0.0
        %483 = vmatpush.msra.mxu0 0.0
        %484 = vmatpush.msra.mxu0 0.0
        %485 = vmatpush.msra.mxu0 0.0
        %486 = vmatpush.msra.mxu0 0.0
        %487 = vmatpush.msra.mxu0 0.0
        %488 = vmatpush.msra.mxu0 0.0
        %489 = vmatpush.msra.mxu0 0.0
        %490 = vmatpush.msra.mxu0 %v352
        %491 = vmatmul.f32.gmra.mxu0 %v473
        %v492 = vpop.f32.mrf.mxu0
        %v493 = vadd.f32 0.0, %v492
        %494 = vdwg.mxu0
        %v496 = vsel %vm395, %v456, 0
        %498 = vmatpush.msra.mxu0 0.0
        %499 = vmatpush.msra.mxu0 0.0
        %500 = vmatpush.msra.mxu0 0.0
        %501 = vmatpush.msra.mxu0 0.0
        %502 = vmatpush.msra.mxu0 0.0
        %503 = vmatpush.msra.mxu0 0.0
        %504 = vmatpush.msra.mxu0 0.0
        %505 = vmatpush.msra.mxu0 0.0
        %506 = vmatpush.msra.mxu0 0.0
        %507 = vmatpush.msra.mxu0 0.0
        %508 = vmatpush.msra.mxu0 0.0
        %509 = vmatpush.msra.mxu0 0.0
        %510 = vmatpush.msra.mxu0 0.0
        %511 = vmatpush.msra.mxu0 0.0
        %512 = vmatpush.msra.mxu0 0.0
        %513 = vmatpush.msra.mxu0 %v350
        %514 = vmatmul.f32.gmra.mxu0 %v496
        %v515 = vpop.f32.mrf.mxu0
        %v516 = vadd.f32 %v493, %v515
        %517 = vdwg.mxu0
        %v519 = vsel %vm395, %v356, 0
        %v522 = vsel %vm395, %v357, 0
        %524 = vmatpush.msra.mxu0 0.0
        %525 = vmatpush.msra.mxu0 0.0
        %526 = vmatpush.msra.mxu0 0.0
        %527 = vmatpush.msra.mxu0 0.0
        %528 = vmatpush.msra.mxu0 0.0
        %529 = vmatpush.msra.mxu0 0.0
        %530 = vmatpush.msra.mxu0 0.0
        %531 = vmatpush.msra.mxu0 0.0
        %532 = vmatpush.msra.mxu0 0.0
        %533 = vmatpush.msra.mxu0 0.0
        %534 = vmatpush.msra.mxu0 0.0
        %535 = vmatpush.msra.mxu0 0.0
        %536 = vmatpush.msra.mxu0 0.0
        %537 = vmatpush.msra.mxu0 0.0
        %538 = vmatpush.msra.mxu0 0.0
        %539 = vmatpush.msra.mxu0 %v516
        %540 = vmatmul.f32.gmra.mxu0 %v519
        %v541 = vpop.f32.mrf.mxu0
        %v542 = vadd.f32 0.0, %v541
        %543 = vmatmul.f32.gmra.mxu0 %v522
        %v544 = vpop.f32.mrf.mxu0
        %v545 = vadd.f32 0.0, %v544
        %546 = vdwg.mxu0
        %v548 = vsel %vm395, %v353, 0
        %v551 = vsel %vm395, %v354, 0
        %553 = vmatpush.msra.mxu0 0.0
        %554 = vmatpush.msra.mxu0 0.0
        %555 = vmatpush.msra.mxu0 0.0
        %556 = vmatpush.msra.mxu0 0.0
        %557 = vmatpush.msra.mxu0 0.0
        %558 = vmatpush.msra.mxu0 0.0
        %559 = vmatpush.msra.mxu0 0.0
        %560 = vmatpush.msra.mxu0 0.0
        %561 = vmatpush.msra.mxu0 0.0
        %562 = vmatpush.msra.mxu0 0.0
        %563 = vmatpush.msra.mxu0 0.0
        %564 = vmatpush.msra.mxu0 0.0
        %565 = vmatpush.msra.mxu0 0.0
        %566 = vmatpush.msra.mxu0 0.0
        %567 = vmatpush.msra.mxu0 0.0
        %568 = vmatpush.msra.mxu0 %v440
        %569 = vmatmul.f32.gmra.mxu0 %v548
        %v570 = vpop.f32.mrf.mxu0
        %v571 = vadd.f32 %v542, %v570
        %572 = vmatmul.f32.gmra.mxu0 %v551
        %v573 = vpop.f32.mrf.mxu0
        %v574 = vadd.f32 %v545, %v573
        %575 = vdwg.mxu0
        %v576 = vld [vmem:[%s291] sm:$0xff]
        %v577 = vld [vmem:[%s291 + $0x8] sm:$0xff]
        %v578 = vadd.f32 %v576, %v571
        %v579 = vadd.f32 %v577, %v574
        %s580 = sld [smem:[#allocation7]]
        %v581 = vstv %s580
        %v582 = vadd.f32 %v578, %v581
        %v583 = vadd.f32 %v579, %v581
        %vm584 = vcmask 130048
        %585 = vst.msk [vmem:[%s339] sm:$0xff] %vm584, %v582
        %586 = vst.msk [vmem:[%s339 + $0x8] sm:$0xff] %vm584, %v583
        %s587 = sld [smem:[#allocation6 + $0x4]]
        %v588 = vstv %s587
        %v589 = vmul.f32 %v358, %v588
        %s590 = sld [smem:[#allocation6 + $0xc]]
        %v591 = vstv %s590
        %v592 = vmul.f32 %v360, %v591
        %v593 = vadd.f32 %v589, %v592
        %s594 = sld [smem:[#allocation6 + $0x14]]
        %v595 = vstv %s594
        %v596 = vmul.f32 %v362, %v595
        %v597 = vadd.f32 %v593, %v596
        %s598 = sld [smem:[#allocation6 + $0x1c]]
        %v599 = vstv %s598
        %v600 = vmul.f32 %v364, %v599
        %v601 = vadd.f32 %v597, %v600
        %s602 = sld [smem:[#allocation6 + $0x5]]
        %v603 = vstv %s602
        %v604 = vmul.f32 %v358, %v603
        %s605 = sld [smem:[#allocation6 + $0xd]]
        %v606 = vstv %s605
        %v607 = vmul.f32 %v360, %v606
        %v608 = vadd.f32 %v604, %v607
        %s609 = sld [smem:[#allocation6 + $0x15]]
        %v610 = vstv %s609
        %v611 = vmul.f32 %v362, %v610
        %v612 = vadd.f32 %v608, %v611
        %s613 = sld [smem:[#allocation6 + $0x1d]]
        %v614 = vstv %s613
        %v615 = vmul.f32 %v364, %v614
        %v616 = vadd.f32 %v612, %v615
        %v618 = vsel %vm395, %v616, 0
        %620 = vmatpush.msra.mxu0 0.0
        %621 = vmatpush.msra.mxu0 0.0
        %622 = vmatpush.msra.mxu0 0.0
        %623 = vmatpush.msra.mxu0 0.0
        %624 = vmatpush.msra.mxu0 0.0
        %625 = vmatpush.msra.mxu0 0.0
        %626 = vmatpush.msra.mxu0 0.0
        %627 = vmatpush.msra.mxu0 0.0
        %628 = vmatpush.msra.mxu0 0.0
        %629 = vmatpush.msra.mxu0 0.0
        %630 = vmatpush.msra.mxu0 0.0
        %631 = vmatpush.msra.mxu0 0.0
        %632 = vmatpush.msra.mxu0 0.0
        %633 = vmatpush.msra.mxu0 0.0
        %634 = vmatpush.msra.mxu0 0.0
        %635 = vmatpush.msra.mxu0 %v352
        %636 = vmatmul.f32.gmra.mxu0 %v618
        %v637 = vpop.f32.mrf.mxu0
        %v638 = vadd.f32 0.0, %v637
        %639 = vdwg.mxu0
        %v641 = vsel %vm395, %v601, 0
        %643 = vmatpush.msra.mxu0 0.0
        %644 = vmatpush.msra.mxu0 0.0
        %645 = vmatpush.msra.mxu0 0.0
        %646 = vmatpush.msra.mxu0 0.0
        %647 = vmatpush.msra.mxu0 0.0
        %648 = vmatpush.msra.mxu0 0.0
        %649 = vmatpush.msra.mxu0 0.0
        %650 = vmatpush.msra.mxu0 0.0
        %651 = vmatpush.msra.mxu0 0.0
        %652 = vmatpush.msra.mxu0 0.0
        %653 = vmatpush.msra.mxu0 0.0
        %654 = vmatpush.msra.mxu0 0.0
        %655 = vmatpush.msra.mxu0 0.0
        %656 = vmatpush.msra.mxu0 0.0
        %657 = vmatpush.msra.mxu0 0.0
        %658 = vmatpush.msra.mxu0 %v350
        %659 = vmatmul.f32.gmra.mxu0 %v641
        %v660 = vpop.f32.mrf.mxu0
        %v661 = vadd.f32 %v638, %v660
        %662 = vdwg.mxu0
        %s663 = sld [smem:[#allocation6 + $0x6]]
        %v664 = vstv %s663
        %v665 = vmul.f32 %v358, %v664
        %s666 = sld [smem:[#allocation6 + $0xe]]
        %v667 = vstv %s666
        %v668 = vmul.f32 %v360, %v667
        %v669 = vadd.f32 %v665, %v668
        %s670 = sld [smem:[#allocation6 + $0x16]]
        %v671 = vstv %s670
        %v672 = vmul.f32 %v362, %v671
        %v673 = vadd.f32 %v669, %v672
        %s674 = sld [smem:[#allocation6 + $0x1e]]
        %v675 = vstv %s674
        %v676 = vmul.f32 %v364, %v675
        %v677 = vadd.f32 %v673, %v676
        %s678 = sld [smem:[#allocation6 + $0x7]]
        %v679 = vstv %s678
        %v680 = vmul.f32 %v358, %v679
        %s681 = sld [smem:[#allocation6 + $0xf]]
        %v682 = vstv %s681
        %v683 = vmul.f32 %v360, %v682
        %v684 = vadd.f32 %v680, %v683
        %s685 = sld [smem:[#allocation6 + $0x17]]
        %v686 = vstv %s685
        %v687 = vmul.f32 %v362, %v686
        %v688 = vadd.f32 %v684, %v687
        %s689 = sld [smem:[#allocation6 + $0x1f]]
        %v690 = vstv %s689
        %v691 = vmul.f32 %v364, %v690
        %v692 = vadd.f32 %v688, %v691
        %v694 = vsel %vm395, %v692, 0
        %696 = vmatpush.msra.mxu0 0.0
        %697 = vmatpush.msra.mxu0 0.0
        %698 = vmatpush.msra.mxu0 0.0
        %699 = vmatpush.msra.mxu0 0.0
        %700 = vmatpush.msra.mxu0 0.0
        %701 = vmatpush.msra.mxu0 0.0
        %702 = vmatpush.msra.mxu0 0.0
        %703 = vmatpush.msra.mxu0 0.0
        %704 = vmatpush.msra.mxu0 0.0
        %705 = vmatpush.msra.mxu0 0.0
        %706 = vmatpush.msra.mxu0 0.0
        %707 = vmatpush.msra.mxu0 0.0
        %708 = vmatpush.msra.mxu0 0.0
        %709 = vmatpush.msra.mxu0 0.0
        %710 = vmatpush.msra.mxu0 0.0
        %711 = vmatpush.msra.mxu0 %v352
        %712 = vmatmul.f32.gmra.mxu0 %v694
        %v713 = vpop.f32.mrf.mxu0
        %v714 = vadd.f32 0.0, %v713
        %715 = vdwg.mxu0
        %v717 = vsel %vm395, %v677, 0
        %719 = vmatpush.msra.mxu0 0.0
        %720 = vmatpush.msra.mxu0 0.0
        %721 = vmatpush.msra.mxu0 0.0
        %722 = vmatpush.msra.mxu0 0.0
        %723 = vmatpush.msra.mxu0 0.0
        %724 = vmatpush.msra.mxu0 0.0
        %725 = vmatpush.msra.mxu0 0.0
        %726 = vmatpush.msra.mxu0 0.0
        %727 = vmatpush.msra.mxu0 0.0
        %728 = vmatpush.msra.mxu0 0.0
        %729 = vmatpush.msra.mxu0 0.0
        %730 = vmatpush.msra.mxu0 0.0
        %731 = vmatpush.msra.mxu0 0.0
        %732 = vmatpush.msra.mxu0 0.0
        %733 = vmatpush.msra.mxu0 0.0
        %734 = vmatpush.msra.mxu0 %v350
        %735 = vmatmul.f32.gmra.mxu0 %v717
        %v736 = vpop.f32.mrf.mxu0
        %v737 = vadd.f32 %v714, %v736
        %738 = vdwg.mxu0
        %739 = vmatpush.msra.mxu0 0.0
        %740 = vmatpush.msra.mxu0 0.0
        %741 = vmatpush.msra.mxu0 0.0
        %742 = vmatpush.msra.mxu0 0.0
        %743 = vmatpush.msra.mxu0 0.0
        %744 = vmatpush.msra.mxu0 0.0
        %745 = vmatpush.msra.mxu0 0.0
        %746 = vmatpush.msra.mxu0 0.0
        %747 = vmatpush.msra.mxu0 0.0
        %748 = vmatpush.msra.mxu0 0.0
        %749 = vmatpush.msra.mxu0 0.0
        %750 = vmatpush.msra.mxu0 0.0
        %751 = vmatpush.msra.mxu0 0.0
        %752 = vmatpush.msra.mxu0 0.0
        %753 = vmatpush.msra.mxu0 0.0
        %754 = vmatpush.msra.mxu0 %v737
        %755 = vmatmul.f32.gmra.mxu0 %v519
        %v756 = vpop.f32.mrf.mxu0
        %v757 = vadd.f32 0.0, %v756
        %758 = vmatmul.f32.gmra.mxu0 %v522
        %v759 = vpop.f32.mrf.mxu0
        %v760 = vadd.f32 0.0, %v759
        %761 = vdwg.mxu0
        %762 = vmatpush.msra.mxu0 0.0
        %763 = vmatpush.msra.mxu0 0.0
        %764 = vmatpush.msra.mxu0 0.0
        %765 = vmatpush.msra.mxu0 0.0
        %766 = vmatpush.msra.mxu0 0.0
        %767 = vmatpush.msra.mxu0 0.0
        %768 = vmatpush.msra.mxu0 0.0
        %769 = vmatpush.msra.mxu0 0.0
        %770 = vmatpush.msra.mxu0 0.0
        %771 = vmatpush.msra.mxu0 0.0
        %772 = vmatpush.msra.mxu0 0.0
        %773 = vmatpush.msra.mxu0 0.0
        %774 = vmatpush.msra.mxu0 0.0
        %775 = vmatpush.msra.mxu0 0.0
        %776 = vmatpush.msra.mxu0 0.0
        %777 = vmatpush.msra.mxu0 %v661
        %778 = vmatmul.f32.gmra.mxu0 %v548
        %v779 = vpop.f32.mrf.mxu0
        %v780 = vadd.f32 %v757, %v779
        %781 = vmatmul.f32.gmra.mxu0 %v551
        %v782 = vpop.f32.mrf.mxu0
        %v783 = vadd.f32 %v760, %v782
        %784 = vdwg.mxu0
        %s785 = scalar_lea.vmem %s291, 16 [#allocation2]
        %v786 = vld [vmem:[%s785] sm:$0xff]
        %v787 = vld [vmem:[%s785 + $0x8] sm:$0xff]
        %v788 = vadd.f32 %v786, %v780
        %v789 = vadd.f32 %v787, %v783
        %s790 = sld [smem:[#allocation7 + $0x1]]
        %v791 = vstv %s790
        %v792 = vadd.f32 %v788, %v791
        %v793 = vadd.f32 %v789, %v791
        %s794 = scalar_lea.vmem %s339, 16 [#allocation9]
        %795 = vst.msk [vmem:[%s794] sm:$0xff] %vm584, %v792
        %796 = vst.msk [vmem:[%s794 + $0x8] sm:$0xff] %vm584, %v793
        %s797 = sand.u32 %s187, 1
        %s798 = scalar_lea.sflag [#allocation4], %s797
        %s799 = sand.u32 %s187, 1
        %s800 = smul.addr %s799, 32
        %s801 = scalar_lea.vmem [#allocation9], %s800
        // Predicated region
        $region57: #{up_forward.1} parent=43 // pred_check
          %p802 = pneg %p197
        $region58: #{up_forward.1} parent=43 // pred_check_branch
          %804 = sbr.rel (%p802) target = $region60
        $region59: #{up_forward.1} parent=43 // pred_region
          %s805 = smul.u32 2, %s30
          %807 = vsyncadd %s798, 0
          %s808 = smul.addr %s29, 4
          %s809 = sadd.s32 %s805, %s808
          %s810 = smul.addr %s809, 8
          %s811 = scalar_lea.hbm %s6, %s810
          %s812 = sshll.u32 %s801, 4
          %s813 = int_to_ptr.vmem [resolvable:$true] %s812
          %s814 = sshll.u32 %s811, 4
          %s815 = int_to_ptr.hbm [resolvable:$true] %s814
          %820 = dma.vmem_to_hbm [thread:$0]  %s813, 512, %s815, %s798, 128, 128, 8
        $region60: #{up_forward.1} parent=43 // pred_fallthru
          _
      $region44: #{up_forward.1} parent=5 // pred_fallthru
        _
      %p821 = scmp.le.s32.totalorder 2, %s20
      // Predicated region
      $region61: #{up_forward.1} parent=5 // pred_check
        %p822 = pneg %p821
      $region62: #{up_forward.1} parent=5 // pred_check_branch
        %824 = sbr.rel (%p822) target = $region64
      $region63: #{up_forward.1} parent=5 // pred_region
        %s825 = ssub.s32 %s20, 2
        // Predicated region
        $region65: #{up_forward.1} parent=63 // pred_check
          %p826 = pneg %p203
        $region66: #{up_forward.1} parent=63 // pred_check_branch
          %828 = sbr.rel (%p826) target = $region68
        $region67: #{up_forward.1} parent=63 // pred_region
          %s829 = sand.u32 %s188, 1
          %s830 = scalar_lea.sflag [#allocation4], %s829
          %s831 = sand.u32 %s188, 1
          %s832 = smul.addr %s831, 32
          %s833 = scalar_lea.vmem [#allocation9], %s832
          %835 = dma.done %s830, 512
        $region68: #{up_forward.1} parent=63 // pred_fallthru
          _
      $region64: #{up_forward.1} parent=5 // pred_fallthru
        _
    $region6: #{up_forward.1} parent=1 // loop_footer
      %s24 = sadd.s32 1, %s20
    $region7: #{up_forward.1} parent=1 // loop_footer_branch
      %19 = sbr.rel target = $region3
    $region8: #{up_forward.1} parent=1 // loop_exit
      _
    %836 = vsyncpa [#allocation3], 1
    %s837 = scalar_lea.sflag [#allocation3], 1
    %838 = vsyncpa %s837, 1
    %839 = vsyncpa [#allocation4], 1
    %s840 = scalar_lea.sflag [#allocation4], 1
    %841 = vsyncpa %s840, 1
    %842 = vsyncpa [#allocation5], 1
    %s843 = scalar_lea.sflag [#allocation5], 1
    %844 = vsyncpa %s843, 1
    %845 = vsyncpa [#allocation8], 1

</llo_original>
